<compile_context>
chip_gen: v5e
topology: v5e:2x2
jax: 0.10.0
libtpu: 0.0.40
codegen_flags: <defaults>
</compile_context>

<pallas_src>
import jax
import jax.numpy as jnp
import numpy as np
from jax.experimental import pallas as pl
from jax.experimental.pallas import tpu as pltpu


# ---------------------------------------------------------------------------
# Kernel
# ---------------------------------------------------------------------------
def _make_kernel(H, W, HWp):
    HW = H * W  # real (unpadded) spatial size; HWp >= HW is the lane-padded size

    def kernel(w_ref, x_ref, o_ref, sum_sc, max_sc):
        # w_ref:   SMEM (18,) f32      conv taps; avg-channel taps pre-scaled by 1/C
        # x_ref:   VMEM (TB, TC, HWp)  one (batch-tile, channel-tile) slab, lane-dense
        # o_ref:   VMEM (TB, HWp)
        # sum_sc:  VMEM (TB, HWp) f32  running channel sum
        # max_sc:  VMEM (TB, HWp) f32  running channel max
        kc = pl.program_id(1)

        @pl.when(kc == 0)
        def _init():
            sum_sc[...] = jnp.zeros_like(sum_sc)
            max_sc[...] = jnp.full_like(max_sc, -jnp.inf)

        x = x_ref[...].astype(jnp.float32)                    # (TB, TC, HWp)
        sum_sc[...] = sum_sc[...] + jnp.sum(x, axis=1)
        max_sc[...] = jnp.maximum(max_sc[...], jnp.max(x, axis=1))

        @pl.when(kc == pl.num_programs(1) - 1)
        def _finalize():
            s = sum_sc[...]                                   # (TB, HWp)
            m = max_sc[...]
            tb = s.shape[0]

            # Boundary masks for the 3x3 conv (padding=1) built on the real
            # HxW geometry.  Padded tail positions (>= HW) produce garbage
            # that the host-side slice discards.
            pos = jax.lax.broadcasted_iota(jnp.int32, (tb, HWp), 1)
            col = pos % W
            row_ok = (pos >= W, None, pos < (H - 1) * W)      # di = 0, 1, 2
            col_ok = (col >= 1, None, col <= W - 2)           # dj = 0, 1, 2

            # Hoist the combined tap masks; shared by both conv input channels.
            masks = {}
            for di in range(3):
                for dj in range(3):
                    msk = row_ok[di]
                    if col_ok[dj] is not None:
                        msk = col_ok[dj] if msk is None else (msk & col_ok[dj])
                    masks[(di, dj)] = msk

            def tap(v, di, dj):
                shift = (di - 1) * W + (dj - 1)               # flat offset of this tap
                r = (-shift) % HWp
                t = v if r == 0 else pltpu.roll(v, shift=r, axis=1)
                msk = masks[(di, dj)]
                return t if msk is None else jnp.where(msk, t, 0.0)

            # Two partial accumulators (one per conv input channel) so the
            # 18 multiply-adds don't form a single serial chain.
            acc_s = jnp.zeros((tb, HWp), jnp.float32)
            acc_m = jnp.zeros((tb, HWp), jnp.float32)
            for di in range(3):
                for dj in range(3):
                    idx = di * 3 + dj
                    acc_s = acc_s + w_ref[idx] * tap(s, di, dj)
                    acc_m = acc_m + w_ref[9 + idx] * tap(m, di, dj)

            o_ref[...] = jax.nn.sigmoid(acc_s + acc_m).astype(o_ref.dtype)

    return kernel


# ---------------------------------------------------------------------------
# Tiling / budgeting helpers
# ---------------------------------------------------------------------------
def _tpu_vmem_bytes(default=64 << 20):
    """VMEM capacity (per TensorCore) if queryable, else a conservative default."""
    try:
        info = pltpu.get_tpu_info()
    except Exception:
        return default
    for attr in ("vmem_capacity_bytes", "vmem_size_bytes", "vmem_bytes"):
        v = getattr(info, attr, None)
        if v:
            try:
                return int(v)
            except (TypeError, ValueError):
                pass
    return default


def _aligned_divisors(n, align=8):
    """Divisors of n that are multiples of `align` or equal to n (8,128 rule)."""
    return [d for d in range(1, n + 1) if n % d == 0 and (d % align == 0 or d == n)]


def _pick_channel_tile(C, HWp, itemsize, budget):
    """Modest, sublane-aligned channel tile: push the reduction into cross-step
    VPU accumulation rather than big in-block XLU sublane folds."""
    cands = _aligned_divisors(C)
    fit = [d for d in cands if d * HWp * itemsize <= budget] or [min(cands)]
    modest = [d for d in fit if d <= 32]
    return max(modest) if modest else min(fit)


def _pick_batch_tile(N, tc, HWp, itemsize, budget):
    """Largest aligned batch tile under the budget, preferring >=2 batch blocks
    so both TensorCores get work on v7x (harmless on single-TC parts)."""
    per_b = max(1, tc * HWp * itemsize)
    aligned = _aligned_divisors(N)
    fit = [d for d in aligned if d * per_b <= budget]
    if not fit:
        # Nothing aligned fits: fall back to any fitting divisor (masked output
        # stores), else the smallest aligned divisor.
        any_fit = [d for d in range(1, N + 1) if N % d == 0 and d * per_b <= budget]
        fit = any_fit or [min(aligned)]
    multi = [d for d in fit if N // d >= 2]
    return max(multi) if multi else max(fit)


def _make_x_spec(tb, tc, HWp, nbuf):
    idx = lambda n, kc: (n, kc, 0)
    if nbuf > 2:
        try:
            return pl.BlockSpec((tb, tc, HWp), idx, pipeline_mode=pl.Buffered(nbuf))
        except TypeError:  # older BlockSpec without pipeline_mode
            pass
    return pl.BlockSpec((tb, tc, HWp), idx)


# ---------------------------------------------------------------------------
# Wrapper
# ---------------------------------------------------------------------------
def spatial_attention(x, w_agg):
    """x: (N, C, H, W); w_agg: (1, 2, 3, 3) [avg-chan, max-chan] -> (N, 1, H, W)."""
    N, C, H, W = x.shape
    HW = H * W
    HWp = ((HW + 127) // 128) * 128            # lane-dense spatial size
    itemsize = jnp.dtype(x.dtype).itemsize

    # Fold the mean's 1/C into the avg-channel conv weights -> kernel only sums.
    w = jnp.asarray(w_agg, jnp.float32)
    w = w.at[:, 0].multiply(1.0 / C)
    w_flat = w.reshape(-1)                     # (18,)

    # Lane-dense layout: last axis is H*W padded to a multiple of 128.
    x_flat = x.reshape(N, C, HW)
    if HWp != HW:
        x_flat = jnp.pad(x_flat, ((0, 0), (0, 0), (0, HWp - HW)))

    # Generation-aware budgets (v5e/v6e: 128 MiB VMEM; v7x: 64 MiB per TC).
    vmem_cap = _tpu_vmem_bytes()
    if vmem_cap >= (100 << 20):                # v5e / v6e class
        limit_cap, block_budget = 96 << 20, 16 << 20
    else:                                      # v7x class (or unknown -> safe)
        limit_cap, block_budget = 48 << 20, 8 << 20

    # Tile priority: modest channel tile first, then grow the batch tile.
    tc = _pick_channel_tile(C, HWp, itemsize, block_budget)
    tb = _pick_batch_tile(N, tc, HWp, itemsize, block_budget)
    grid = (N // tb, C // tc)

    # Deeper input buffering only pays off when the reduction has >=3 steps.
    nbuf = 3 if (C // tc) >= 3 else 2

    x_block = tb * tc * HWp * itemsize
    out_block = tb * HWp * itemsize
    acc_block = tb * HWp * 4
    vmem_need = nbuf * x_block + 2 * out_block + 2 * acc_block
    vmem_limit = int(min(limit_cap, max(16 << 20, vmem_need + (4 << 20))))

    cost = pl.CostEstimate(
        flops=int(2 * N * C * HWp + 20 * N * HWp),
        transcendentals=int(N * HWp),
        bytes_accessed=int(N * C * HWp * itemsize + N * HWp * itemsize + 18 * 4),
    )

    kernel = _make_kernel(H, W, HWp)

    out_flat = pl.pallas_call(
        kernel,
        out_shape=jax.ShapeDtypeStruct((N, HWp), x.dtype),
        grid_spec=pltpu.PrefetchScalarGridSpec(
            num_scalar_prefetch=0,
            grid=grid,
            in_specs=[
                pl.BlockSpec(memory_space=pltpu.MemorySpace.SMEM),  # conv weights
                _make_x_spec(tb, tc, HWp, nbuf),                    # x slabs
            ],
            out_specs=pl.BlockSpec((tb, HWp), lambda n, kc: (n, 0)),
            scratch_shapes=[pltpu.VMEM((tb, HWp), jnp.float32),
                            pltpu.VMEM((tb, HWp), jnp.float32)],
        ),
        compiler_params=pltpu.CompilerParams(
            dimension_semantics=("parallel", "arbitrary"),
            vmem_limit_bytes=vmem_limit),
        cost_estimate=cost,
    )(w_flat, x_flat)

    out = out_flat[:, :HW] if HWp != HW else out_flat
    return out.reshape(N, 1, H, W)


# ---------------------------------------------------------------------------
# Pure-JAX reference
# ---------------------------------------------------------------------------
def spatial_attention_ref(x, w_agg):
    avg = jnp.mean(x, axis=1, keepdims=True)
    mx = jnp.max(x, axis=1, keepdims=True)
    f = jnp.concatenate([avg, mx], axis=1)
    y = jax.lax.conv_general_dilated(
        f, w_agg, window_strides=(1, 1), padding=((1, 1), (1, 1)),
        dimension_numbers=("NCHW", "OIHW", "NCHW"))
    return jax.nn.sigmoid(y)


if __name__ == "__main__":
    key = jax.random.PRNGKey(0)
    kx, kw = jax.random.split(key)

    N, C, H, W = 2, 4, 16, 16
    x = jax.random.normal(kx, (N, C, H, W), dtype=jnp.float32)
    # Deterministic synthetic weights for aggConv: (out=1, in=2, kh=3, kw=3).
    w_agg = jax.random.normal(kw, (1, 2, 3, 3), dtype=jnp.float32) * 0.1

    out = jax.block_until_ready(spatial_attention(x, w_agg))
    ref = jax.block_until_ready(spatial_attention_ref(x, w_agg))

    np.testing.assert_allclose(np.asarray(out), np.asarray(ref),
                               rtol=1e-5, atol=1e-5)

    print("KERNEL_OK")
</pallas_src>

<mosaic_0001>
module attributes {stable_mosaic.version = 11 : i64} {
  func.func @kernel(%arg0: i32, %arg1: i32, %arg2: memref<18xf32, #tpu.memory_space<smem>>, %arg3: memref<2x4x256xf32, #tpu.memory_space<vmem>>, %arg4: memref<2x256xf32, #tpu.memory_space<vmem>>, %arg5: memref<2x256xf32, #tpu.memory_space<vmem>>, %arg6: memref<2x256xf32, #tpu.memory_space<vmem>>) attributes {dimension_semantics = [#tpu.dimension_semantics<parallel>, #tpu.dimension_semantics<arbitrary>], iteration_bounds = array<i64: 1, 1>, scalar_prefetch = 0 : i64, scratch_operands = 2 : i64, tpu.core_type = #tpu.core_type<tc>, window_params = [{transform_indices = @transform_0, window_bounds = array<i64: 18>}, {transform_indices = @transform_1, window_bounds = array<i64: 2, 4, 256>}, {transform_indices = @transform_2, window_bounds = array<i64: 2, 256>}]} {
    %c0_i32 = arith.constant 0 : i32
    %0 = arith.cmpi eq, %arg1, %c0_i32 : i32
    %1 = arith.extui %0 : i1 to i32
    %c0_i32_0 = arith.constant 0 : i32
    %2 = arith.cmpi ne, %1, %c0_i32_0 : i32
    scf.if %2 {
      %cst_14 = arith.constant 0.000000e+00 : f32
      %15 = vector.broadcast %cst_14 : f32 to vector<2x256xf32>
      %c0_15 = arith.constant 0 : index
      %c0_16 = arith.constant 0 : index
      %16 = vector.load %arg5[%c0_15, %c0_16] : memref<2x256xf32, #tpu.memory_space<vmem>>, vector<2x256xf32>
      tpu.vector_store %arg5[%c0_15, %c0_16], %15 {strides = array<i32>} : memref<2x256xf32, #tpu.memory_space<vmem>>, vector<2x256xf32>,
      %cst_17 = arith.constant 0xFF800000 : f32
      %17 = vector.broadcast %cst_17 : f32 to vector<2x256xf32>
      %c0_18 = arith.constant 0 : index
      %c0_19 = arith.constant 0 : index
      %18 = vector.load %arg6[%c0_18, %c0_19] : memref<2x256xf32, #tpu.memory_space<vmem>>, vector<2x256xf32>
      tpu.vector_store %arg6[%c0_18, %c0_19], %17 {strides = array<i32>} : memref<2x256xf32, #tpu.memory_space<vmem>>, vector<2x256xf32>,
    } else {
    }
    %c0 = arith.constant 0 : index
    %c0_1 = arith.constant 0 : index
    %c0_2 = arith.constant 0 : index
    %3 = vector.load %arg3[%c0, %c0_1, %c0_2] : memref<2x4x256xf32, #tpu.memory_space<vmem>>, vector<2x4x256xf32>
    %c0_3 = arith.constant 0 : index
    %c0_4 = arith.constant 0 : index
    %4 = vector.load %arg5[%c0_3, %c0_4] : memref<2x256xf32, #tpu.memory_space<vmem>>, vector<2x256xf32>
    %cst = arith.constant dense<0.000000e+00> : vector<2x256xf32>
    %5 = vector.multi_reduction <add>, %3, %cst [1] : vector<2x4x256xf32> to vector<2x256xf32>
    %6 = arith.addf %4, %5 : vector<2x256xf32>
    %c0_5 = arith.constant 0 : index
    %c0_6 = arith.constant 0 : index
    %7 = vector.load %arg5[%c0_5, %c0_6] : memref<2x256xf32, #tpu.memory_space<vmem>>, vector<2x256xf32>
    tpu.vector_store %arg5[%c0_5, %c0_6], %6 {strides = array<i32>} : memref<2x256xf32, #tpu.memory_space<vmem>>, vector<2x256xf32>,
    %c0_7 = arith.constant 0 : index
    %c0_8 = arith.constant 0 : index
    %8 = vector.load %arg6[%c0_7, %c0_8] : memref<2x256xf32, #tpu.memory_space<vmem>>, vector<2x256xf32>
    %cst_9 = arith.constant dense<0xFF800000> : vector<2x256xf32>
    %9 = vector.multi_reduction <maximumf>, %3, %cst_9 [1] : vector<2x4x256xf32> to vector<2x256xf32>
    %10 = arith.maximumf %8, %9 : vector<2x256xf32>
    %c0_10 = arith.constant 0 : index
    %c0_11 = arith.constant 0 : index
    %11 = vector.load %arg6[%c0_10, %c0_11] : memref<2x256xf32, #tpu.memory_space<vmem>>, vector<2x256xf32>
    tpu.vector_store %arg6[%c0_10, %c0_11], %10 {strides = array<i32>} : memref<2x256xf32, #tpu.memory_space<vmem>>, vector<2x256xf32>,
    %c0_i32_12 = arith.constant 0 : i32
    %12 = arith.cmpi eq, %arg1, %c0_i32_12 : i32
    %13 = arith.extui %12 : i1 to i32
    %c0_i32_13 = arith.constant 0 : i32
    %14 = arith.cmpi ne, %13, %c0_i32_13 : i32
    scf.if %14 {
      %c0_14 = arith.constant 0 : index
      %c0_15 = arith.constant 0 : index
      %15 = vector.load %arg5[%c0_14, %c0_15] : memref<2x256xf32, #tpu.memory_space<vmem>>, vector<2x256xf32>
      %c0_16 = arith.constant 0 : index
      %c0_17 = arith.constant 0 : index
      %16 = vector.load %arg6[%c0_16, %c0_17] : memref<2x256xf32, #tpu.memory_space<vmem>>, vector<2x256xf32>
      %17 = tpu.iota {dimensions = array<i32: 1>} : vector<2x256xi32>
      %c16_i32 = arith.constant 16 : i32
      %c0_i32_18 = arith.constant 0 : i32
      %18 = arith.cmpi eq, %c16_i32, %c0_i32_18 : i32
      %c1_i32 = arith.constant 1 : i32
      %19 = arith.select %18, %c1_i32, %c16_i32 : i32
      %20 = vector.broadcast %19 : i32 to vector<2x256xi32>
      %21 = arith.remsi %17, %20 : vector<2x256xi32>
      %c0_i32_19 = arith.constant 0 : i32
      %22 = vector.broadcast %c0_i32_19 : i32 to vector<2x256xi32>
      %23 = arith.cmpi ne, %21, %22 : vector<2x256xi32>
      %c0_i32_20 = arith.constant 0 : i32
      %24 = vector.broadcast %c0_i32_20 : i32 to vector<2x256xi32>
      %25 = arith.cmpi slt, %21, %24 : vector<2x256xi32>
      %c0_i32_21 = arith.constant 0 : i32
      %26 = arith.cmpi slt, %19, %c0_i32_21 : i32
      %27 = vector.broadcast %26 : i1 to vector<2x256xi1>
      %28 = vector.broadcast %27 : vector<2x256xi1> to vector<2x256xi1>
      %29 = arith.xori %25, %28 : vector<2x256xi1>
      %30 = arith.andi %29, %23 : vector<2x256xi1>
      %31 = vector.broadcast %19 : i32 to vector<2x256xi32>
      %32 = arith.addi %21, %31 : vector<2x256xi32>
      %33 = arith.select %30, %32, %21 : vector<2x256xi1>, vector<2x256xi32>
      %c16_i32_22 = arith.constant 16 : i32
      %34 = vector.broadcast %c16_i32_22 : i32 to vector<2x256xi32>
      %35 = arith.cmpi sge, %17, %34 : vector<2x256xi32>
      %c240_i32 = arith.constant 240 : i32
      %36 = vector.broadcast %c240_i32 : i32 to vector<2x256xi32>
      %37 = arith.cmpi slt, %17, %36 : vector<2x256xi32>
      %c1_i32_23 = arith.constant 1 : i32
      %38 = vector.broadcast %c1_i32_23 : i32 to vector<2x256xi32>
      %39 = arith.cmpi sge, %33, %38 : vector<2x256xi32>
      %c14_i32 = arith.constant 14 : i32
      %40 = vector.broadcast %c14_i32 : i32 to vector<2x256xi32>
      %41 = arith.cmpi sle, %33, %40 : vector<2x256xi32>
      %42 = arith.andi %35, %39 : vector<2x256xi1>
      %43 = arith.andi %35, %41 : vector<2x256xi1>
      %44 = arith.andi %37, %39 : vector<2x256xi1>
      %45 = arith.andi %37, %41 : vector<2x256xi1>
      %cst_24 = arith.constant 0.000000e+00 : f32
      %46 = vector.broadcast %cst_24 : f32 to vector<2x256xf32>
      %cst_25 = arith.constant 0.000000e+00 : f32
      %47 = vector.broadcast %cst_25 : f32 to vector<2x256xf32>
      %c0_26 = arith.constant 0 : index
      %48 = memref.load %arg2[%c0_26] : memref<18xf32, #tpu.memory_space<smem>>
      %c17_i32 = arith.constant 17 : i32
      %49 = tpu.dynamic_rotate %15 by %c17_i32 dim 1 : vector<2x256xf32>, i32 -> vector<2x256xf32>
      %cst_27 = arith.constant 0.000000e+00 : f32
      %50 = vector.broadcast %cst_27 : f32 to vector<2x256xf32>
      %51 = arith.select %42, %49, %50 : vector<2x256xi1>, vector<2x256xf32>
      %52 = vector.broadcast %48 : f32 to vector<2x256xf32>
      %53 = arith.mulf %52, %51 : vector<2x256xf32>
      %54 = arith.addf %46, %53 : vector<2x256xf32>
      %c9 = arith.constant 9 : index
      %55 = memref.load %arg2[%c9] : memref<18xf32, #tpu.memory_space<smem>>
      %c17_i32_28 = arith.constant 17 : i32
      %56 = tpu.dynamic_rotate %16 by %c17_i32_28 dim 1 : vector<2x256xf32>, i32 -> vector<2x256xf32>
      %cst_29 = arith.constant 0.000000e+00 : f32
      %57 = vector.broadcast %cst_29 : f32 to vector<2x256xf32>
      %58 = arith.select %42, %56, %57 : vector<2x256xi1>, vector<2x256xf32>
      %59 = vector.broadcast %55 : f32 to vector<2x256xf32>
      %60 = arith.mulf %59, %58 : vector<2x256xf32>
      %61 = arith.addf %47, %60 : vector<2x256xf32>
      %c1 = arith.constant 1 : index
      %62 = memref.load %arg2[%c1] : memref<18xf32, #tpu.memory_space<smem>>
      %c16_i32_30 = arith.constant 16 : i32
      %63 = tpu.dynamic_rotate %15 by %c16_i32_30 dim 1 : vector<2x256xf32>, i32 -> vector<2x256xf32>
      %cst_31 = arith.constant 0.000000e+00 : f32
      %64 = vector.broadcast %cst_31 : f32 to vector<2x256xf32>
      %65 = arith.select %35, %63, %64 : vector<2x256xi1>, vector<2x256xf32>
      %66 = vector.broadcast %62 : f32 to vector<2x256xf32>
      %67 = arith.mulf %66, %65 : vector<2x256xf32>
      %68 = arith.addf %54, %67 : vector<2x256xf32>
      %c10 = arith.constant 10 : index
      %69 = memref.load %arg2[%c10] : memref<18xf32, #tpu.memory_space<smem>>
      %c16_i32_32 = arith.constant 16 : i32
      %70 = tpu.dynamic_rotate %16 by %c16_i32_32 dim 1 : vector<2x256xf32>, i32 -> vector<2x256xf32>
      %cst_33 = arith.constant 0.000000e+00 : f32
      %71 = vector.broadcast %cst_33 : f32 to vector<2x256xf32>
      %72 = arith.select %35, %70, %71 : vector<2x256xi1>, vector<2x256xf32>
      %73 = vector.broadcast %69 : f32 to vector<2x256xf32>
      %74 = arith.mulf %73, %72 : vector<2x256xf32>
      %75 = arith.addf %61, %74 : vector<2x256xf32>
      %c2 = arith.constant 2 : index
      %76 = memref.load %arg2[%c2] : memref<18xf32, #tpu.memory_space<smem>>
      %c15_i32 = arith.constant 15 : i32
      %77 = tpu.dynamic_rotate %15 by %c15_i32 dim 1 : vector<2x256xf32>, i32 -> vector<2x256xf32>
      %cst_34 = arith.constant 0.000000e+00 : f32
      %78 = vector.broadcast %cst_34 : f32 to vector<2x256xf32>
      %79 = arith.select %43, %77, %78 : vector<2x256xi1>, vector<2x256xf32>
      %80 = vector.broadcast %76 : f32 to vector<2x256xf32>
      %81 = arith.mulf %80, %79 : vector<2x256xf32>
      %82 = arith.addf %68, %81 : vector<2x256xf32>
      %c11 = arith.constant 11 : index
      %83 = memref.load %arg2[%c11] : memref<18xf32, #tpu.memory_space<smem>>
      %c15_i32_35 = arith.constant 15 : i32
      %84 = tpu.dynamic_rotate %16 by %c15_i32_35 dim 1 : vector<2x256xf32>, i32 -> vector<2x256xf32>
      %cst_36 = arith.constant 0.000000e+00 : f32
      %85 = vector.broadcast %cst_36 : f32 to vector<2x256xf32>
      %86 = arith.select %43, %84, %85 : vector<2x256xi1>, vector<2x256xf32>
      %87 = vector.broadcast %83 : f32 to vector<2x256xf32>
      %88 = arith.mulf %87, %86 : vector<2x256xf32>
      %89 = arith.addf %75, %88 : vector<2x256xf32>
      %c3 = arith.constant 3 : index
      %90 = memref.load %arg2[%c3] : memref<18xf32, #tpu.memory_space<smem>>
      %c1_i32_37 = arith.constant 1 : i32
      %91 = tpu.dynamic_rotate %15 by %c1_i32_37 dim 1 : vector<2x256xf32>, i32 -> vector<2x256xf32>
      %cst_38 = arith.constant 0.000000e+00 : f32
      %92 = vector.broadcast %cst_38 : f32 to vector<2x256xf32>
      %93 = arith.select %39, %91, %92 : vector<2x256xi1>, vector<2x256xf32>
      %94 = vector.broadcast %90 : f32 to vector<2x256xf32>
      %95 = arith.mulf %94, %93 : vector<2x256xf32>
      %96 = arith.addf %82, %95 : vector<2x256xf32>
      %c12 = arith.constant 12 : index
      %97 = memref.load %arg2[%c12] : memref<18xf32, #tpu.memory_space<smem>>
      %c1_i32_39 = arith.constant 1 : i32
      %98 = tpu.dynamic_rotate %16 by %c1_i32_39 dim 1 : vector<2x256xf32>, i32 -> vector<2x256xf32>
      %cst_40 = arith.constant 0.000000e+00 : f32
      %99 = vector.broadcast %cst_40 : f32 to vector<2x256xf32>
      %100 = arith.select %39, %98, %99 : vector<2x256xi1>, vector<2x256xf32>
      %101 = vector.broadcast %97 : f32 to vector<2x256xf32>
      %102 = arith.mulf %101, %100 : vector<2x256xf32>
      %103 = arith.addf %89, %102 : vector<2x256xf32>
      %c4 = arith.constant 4 : index
      %104 = memref.load %arg2[%c4] : memref<18xf32, #tpu.memory_space<smem>>
      %105 = vector.broadcast %104 : f32 to vector<2x256xf32>
      %106 = arith.mulf %105, %15 : vector<2x256xf32>
      %107 = arith.addf %96, %106 : vector<2x256xf32>
      %c13 = arith.constant 13 : index
      %108 = memref.load %arg2[%c13] : memref<18xf32, #tpu.memory_space<smem>>
      %109 = vector.broadcast %108 : f32 to vector<2x256xf32>
      %110 = arith.mulf %109, %16 : vector<2x256xf32>
      %111 = arith.addf %103, %110 : vector<2x256xf32>
      %c5 = arith.constant 5 : index
      %112 = memref.load %arg2[%c5] : memref<18xf32, #tpu.memory_space<smem>>
      %c255_i32 = arith.constant 255 : i32
      %113 = tpu.dynamic_rotate %15 by %c255_i32 dim 1 : vector<2x256xf32>, i32 -> vector<2x256xf32>
      %cst_41 = arith.constant 0.000000e+00 : f32
      %114 = vector.broadcast %cst_41 : f32 to vector<2x256xf32>
      %115 = arith.select %41, %113, %114 : vector<2x256xi1>, vector<2x256xf32>
      %116 = vector.broadcast %112 : f32 to vector<2x256xf32>
      %117 = arith.mulf %116, %115 : vector<2x256xf32>
      %118 = arith.addf %107, %117 : vector<2x256xf32>
      %c14 = arith.constant 14 : index
      %119 = memref.load %arg2[%c14] : memref<18xf32, #tpu.memory_space<smem>>
      %c255_i32_42 = arith.constant 255 : i32
      %120 = tpu.dynamic_rotate %16 by %c255_i32_42 dim 1 : vector<2x256xf32>, i32 -> vector<2x256xf32>
      %cst_43 = arith.constant 0.000000e+00 : f32
      %121 = vector.broadcast %cst_43 : f32 to vector<2x256xf32>
      %122 = arith.select %41, %120, %121 : vector<2x256xi1>, vector<2x256xf32>
      %123 = vector.broadcast %119 : f32 to vector<2x256xf32>
      %124 = arith.mulf %123, %122 : vector<2x256xf32>
      %125 = arith.addf %111, %124 : vector<2x256xf32>
      %c6 = arith.constant 6 : index
      %126 = memref.load %arg2[%c6] : memref<18xf32, #tpu.memory_space<smem>>
      %c241_i32 = arith.constant 241 : i32
      %127 = tpu.dynamic_rotate %15 by %c241_i32 dim 1 : vector<2x256xf32>, i32 -> vector<2x256xf32>
      %cst_44 = arith.constant 0.000000e+00 : f32
      %128 = vector.broadcast %cst_44 : f32 to vector<2x256xf32>
      %129 = arith.select %44, %127, %128 : vector<2x256xi1>, vector<2x256xf32>
      %130 = vector.broadcast %126 : f32 to vector<2x256xf32>
      %131 = arith.mulf %130, %129 : vector<2x256xf32>
      %132 = arith.addf %118, %131 : vector<2x256xf32>
      %c15 = arith.constant 15 : index
      %133 = memref.load %arg2[%c15] : memref<18xf32, #tpu.memory_space<smem>>
      %c241_i32_45 = arith.constant 241 : i32
      %134 = tpu.dynamic_rotate %16 by %c241_i32_45 dim 1 : vector<2x256xf32>, i32 -> vector<2x256xf32>
      %cst_46 = arith.constant 0.000000e+00 : f32
      %135 = vector.broadcast %cst_46 : f32 to vector<2x256xf32>
      %136 = arith.select %44, %134, %135 : vector<2x256xi1>, vector<2x256xf32>
      %137 = vector.broadcast %133 : f32 to vector<2x256xf32>
      %138 = arith.mulf %137, %136 : vector<2x256xf32>
      %139 = arith.addf %125, %138 : vector<2x256xf32>
      %c7 = arith.constant 7 : index
      %140 = memref.load %arg2[%c7] : memref<18xf32, #tpu.memory_space<smem>>
      %c240_i32_47 = arith.constant 240 : i32
      %141 = tpu.dynamic_rotate %15 by %c240_i32_47 dim 1 : vector<2x256xf32>, i32 -> vector<2x256xf32>
      %cst_48 = arith.constant 0.000000e+00 : f32
      %142 = vector.broadcast %cst_48 : f32 to vector<2x256xf32>
      %143 = arith.select %37, %141, %142 : vector<2x256xi1>, vector<2x256xf32>
      %144 = vector.broadcast %140 : f32 to vector<2x256xf32>
      %145 = arith.mulf %144, %143 : vector<2x256xf32>
      %146 = arith.addf %132, %145 : vector<2x256xf32>
      %c16 = arith.constant 16 : index
      %147 = memref.load %arg2[%c16] : memref<18xf32, #tpu.memory_space<smem>>
      %c240_i32_49 = arith.constant 240 : i32
      %148 = tpu.dynamic_rotate %16 by %c240_i32_49 dim 1 : vector<2x256xf32>, i32 -> vector<2x256xf32>
      %cst_50 = arith.constant 0.000000e+00 : f32
      %149 = vector.broadcast %cst_50 : f32 to vector<2x256xf32>
      %150 = arith.select %37, %148, %149 : vector<2x256xi1>, vector<2x256xf32>
      %151 = vector.broadcast %147 : f32 to vector<2x256xf32>
      %152 = arith.mulf %151, %150 : vector<2x256xf32>
      %153 = arith.addf %139, %152 : vector<2x256xf32>
      %c8 = arith.constant 8 : index
      %154 = memref.load %arg2[%c8] : memref<18xf32, #tpu.memory_space<smem>>
      %c239_i32 = arith.constant 239 : i32
      %155 = tpu.dynamic_rotate %15 by %c239_i32 dim 1 : vector<2x256xf32>, i32 -> vector<2x256xf32>
      %cst_51 = arith.constant 0.000000e+00 : f32
      %156 = vector.broadcast %cst_51 : f32 to vector<2x256xf32>
      %157 = arith.select %45, %155, %156 : vector<2x256xi1>, vector<2x256xf32>
      %158 = vector.broadcast %154 : f32 to vector<2x256xf32>
      %159 = arith.mulf %158, %157 : vector<2x256xf32>
      %160 = arith.addf %146, %159 : vector<2x256xf32>
      %c17 = arith.constant 17 : index
      %161 = memref.load %arg2[%c17] : memref<18xf32, #tpu.memory_space<smem>>
      %c239_i32_52 = arith.constant 239 : i32
      %162 = tpu.dynamic_rotate %16 by %c239_i32_52 dim 1 : vector<2x256xf32>, i32 -> vector<2x256xf32>
      %cst_53 = arith.constant 0.000000e+00 : f32
      %163 = vector.broadcast %cst_53 : f32 to vector<2x256xf32>
      %164 = arith.select %45, %162, %163 : vector<2x256xi1>, vector<2x256xf32>
      %165 = vector.broadcast %161 : f32 to vector<2x256xf32>
      %166 = arith.mulf %165, %164 : vector<2x256xf32>
      %167 = arith.addf %153, %166 : vector<2x256xf32>
      %168 = arith.addf %160, %167 : vector<2x256xf32>
      %169 = arith.negf %168 : vector<2x256xf32>
      %170 = math.exp %169 : vector<2x256xf32>
      %cst_54 = arith.constant 1.000000e+00 : f32
      %171 = vector.broadcast %cst_54 : f32 to vector<2x256xf32>
      %172 = arith.addf %171, %170 : vector<2x256xf32>
      %173 = arith.divf %171, %172 : vector<2x256xf32>
      %c0_55 = arith.constant 0 : index
      %c0_56 = arith.constant 0 : index
      %174 = vector.load %arg4[%c0_55, %c0_56] : memref<2x256xf32, #tpu.memory_space<vmem>>, vector<2x256xf32>
      tpu.vector_store %arg4[%c0_55, %c0_56], %173 {strides = array<i32>} : memref<2x256xf32, #tpu.memory_space<vmem>>, vector<2x256xf32>,
    } else {
    }
    return
  }
  func.func @transform_0(%arg0: i32, %arg1: i32) -> i32 {
    %c0_i32 = arith.constant 0 : i32
    %c0_i32_0 = arith.constant 0 : i32
    return %c0_i32 : i32
  }
  func.func @transform_1(%arg0: i32, %arg1: i32) -> (i32, i32, i32) {
    %c0_i32 = arith.constant 0 : i32
    %c0_i32_0 = arith.constant 0 : i32
    return %arg0, %arg1, %c0_i32 : i32, i32, i32
  }
  func.func @transform_2(%arg0: i32, %arg1: i32) -> (i32, i32) {
    %c0_i32 = arith.constant 0 : i32
    %c0_i32_0 = arith.constant 0 : i32
    return %arg0, %c0_i32 : i32, i32
  }
}

</mosaic_0001>

<llo_original>
// kernel: tpu_custom_call.1
$region0: #{tpu_custom_call.1}
  #allocation0 [shape = 'u32[]', space=smem, size = 0x4, offset = 0x4, fixed_abs, tag = 'smem constant byte address 0x4 - core index']
  #allocation1 [shape = 'u32[72,128]{1,0:T(1,128)}', space=vmem, size = 0x9000, scoped, tag = 'internal scratch']
  #allocation2 [shape = 'f32[2,256]{1,0:T(2,128)}', space=vmem, size = 0x800, scoped, tag = 'scratch operand']
  #allocation3 [shape = 'f32[2,256]{1,0:T(2,128)}', space=vmem, size = 0x800, scoped, tag = 'scratch operand']
  %s0 = inlined_call_operand.hbm [shape: f32[18], index: 0, kind: input, shape index: {}]
  %s1 = inlined_call_operand.hbm [shape: f32[2,4,256], index: 1, kind: input, shape index: {}]
  %s2 = inlined_call_operand.hbm [shape: f32[2,256], index: 2, kind: output, shape index: {}]
  %s3 = sld [smem:[#allocation0]]
  $region34: #{tpu_custom_call.1} parent=0
    _
  %s5 = ssub.s32 1, %s3
  %s6 = scalar_select 0, %s5, %s3
  $region1: #{tpu_custom_call.1} parent=0
    #allocation4 [shape = 'u8[512]{0}', space=smem, size = 0x200, scoped, tag = 'input window, operand 0, single buffered']
    #allocation5 [shape = 's32[1]{0}', space=sflag, size = 0x4, scoped, tag = 'scoped memory for tpu_custom_call.1']
    #allocation6 [shape = 's32[1]{0}', space=sflag, size = 0x4, scoped, tag = 'scoped memory for tpu_custom_call.1']
    #allocation7 [shape = 's32[1]{0}', space=sflag, size = 0x4, scoped, tag = 'scoped memory for tpu_custom_call.1']
    #allocation8 [shape = 'u8[8192]{0}', space=vmem, size = 0x2000, scoped, tag = 'input window, operand 1, single buffered']
    #allocation9 [shape = 'u8[2048]{0}', space=vmem, size = 0x800, scoped, tag = 'output window, operand 0, single buffered']
    %7 = vsyncpa [#allocation7], 0
    %8 = vsyncpa [#allocation5], 0
    %9 = vsyncpa [#allocation6], 0
    // Predicated region
    $region2: #{tpu_custom_call.1} parent=1 // pred_check
      _
    $region3: #{tpu_custom_call.1} parent=1 // pred_check_branch
      %11 = sbr.rel (0) target = $region5
    $region4: #{tpu_custom_call.1} parent=1 // pred_region
      %13 = vsyncadd [#allocation7], 0
      %s15 = sshll.u32 %s0, 4
      %s16 = int_to_ptr.hbm [resolvable:$true] %s15
      %18 = dma.hbm_to_smem %s16, 16, [#allocation4], [#allocation7]
    $region5: #{tpu_custom_call.1} parent=1 // pred_fallthru
      _
    // Predicated region
    $region6: #{tpu_custom_call.1} parent=1 // pred_check
      _
    $region7: #{tpu_custom_call.1} parent=1 // pred_check_branch
      %20 = sbr.rel (0) target = $region9
    $region8: #{tpu_custom_call.1} parent=1 // pred_region
      %22 = vsyncadd [#allocation5], 0
      %s23 = sshll.u32 %s1, 4
      %s24 = int_to_ptr.hbm [resolvable:$true] %s23
      %s25 = sshll.u32 [#allocation8], 4
      %s26 = int_to_ptr.vmem [resolvable:$true] %s25
      %31 = dma.hbm_to_vmem [thread:$0]  %s24, 256, %s26, [#allocation5], 128, 128, 8
    $region9: #{tpu_custom_call.1} parent=1 // pred_fallthru
      _
    // Predicated region
    $region10: #{tpu_custom_call.1} parent=1 // pred_check
      _
    $region11: #{tpu_custom_call.1} parent=1 // pred_check_branch
      %33 = sbr.rel (0) target = $region13
    $region12: #{tpu_custom_call.1} parent=1 // pred_region
      %35 = dma.done [#allocation7], 16
    $region13: #{tpu_custom_call.1} parent=1 // pred_fallthru
      _
    // Predicated region
    $region14: #{tpu_custom_call.1} parent=1 // pred_check
      _
    $region15: #{tpu_custom_call.1} parent=1 // pred_check_branch
      %37 = sbr.rel (0) target = $region17
    $region16: #{tpu_custom_call.1} parent=1 // pred_region
      %39 = dma.done [#allocation5], 256
    $region17: #{tpu_custom_call.1} parent=1 // pred_fallthru
      _
    %40 = sfence
    %p41 = scmp.eq.s32.totalorder 0, 0
    // Predicated region
    $region18: #{tpu_custom_call.1} parent=1 // pred_check
      %p42 = pneg %p41
    $region19: #{tpu_custom_call.1} parent=1 // pred_check_branch
      %44 = sbr.rel (%p42) target = $region21
    $region20: #{tpu_custom_call.1} parent=1 // pred_region
      %45 = vst [vmem:[#allocation2] sm:$0xf] 0.0
      %46 = vst [vmem:[#allocation3] sm:$0xf] -inf
    $region21: #{tpu_custom_call.1} parent=1 // pred_fallthru
      _
    %v47 = vld [vmem:[#allocation8] sm:$0xff]
    %v48 = vld [vmem:[#allocation8 + $0x8] sm:$0xff]
    %v49 = vld [vmem:[#allocation2] sm:$0xf]
    %52 = vst [vmem:[#allocation1] ss:$2 sm:$0xff] %v47
    %v53 = vld.sshfl [vmem:[#allocation1] sm:$0xff pattern:$0x75316420]
    %v54 = vld.sshfl [vmem:[#allocation1 + $0x8] sm:$0xff pattern:$0x75316420]
    %s55 = scalar_lea.vmem [#allocation1], 16
    %56 = vst [vmem:[%s55] ss:$2 sm:$0xff] %v48
    %v57 = vld.sshfl [vmem:[#allocation1 + $0x10] sm:$0xff pattern:$0x75316420]
    %v58 = vld.sshfl [vmem:[#allocation1 + $0x18] sm:$0xff pattern:$0x75316420]
    %vm63 = vcmask 1043456
    %v64 = vsel %vm63, %v53, 0.0
    %v65 = vrot.slane %v64, 4
    %v66 = vadd.f32 %v64, %v65
    %v67 = vrot.slane %v66, 2
    %v68 = vadd.f32 %v66, %v67
    %v69 = vrot.slane %v68, 1
    %v70 = vadd.f32 %v68, %v69
    %v71 = vsel %vm63, %v54, 0.0
    %v72 = vrot.slane %v71, 4
    %v73 = vadd.f32 %v71, %v72
    %v74 = vrot.slane %v73, 2
    %v75 = vadd.f32 %v73, %v74
    %v76 = vrot.slane %v75, 1
    %v77 = vadd.f32 %v75, %v76
    %v78 = vsel %vm63, %v57, 0.0
    %v79 = vrot.slane %v78, 4
    %v80 = vadd.f32 %v78, %v79
    %v81 = vrot.slane %v80, 2
    %v82 = vadd.f32 %v80, %v81
    %v83 = vrot.slane %v82, 1
    %v84 = vadd.f32 %v82, %v83
    %v85 = vsel %vm63, %v58, 0.0
    %v86 = vrot.slane %v85, 4
    %v87 = vadd.f32 %v85, %v86
    %v88 = vrot.slane %v87, 2
    %v89 = vadd.f32 %v87, %v88
    %v90 = vrot.slane %v89, 1
    %v91 = vadd.f32 %v89, %v90
    %v96 = vrot.slane %v77, 6
    %v97 = vrot.slane %v91, 6
    %vm98 = vcmask 1041408
    %v99 = vsel %vm98, %v70, %v96
    %v100 = vsel %vm98, %v84, %v97
    %vm101 = vcmask 1044484
    %v102 = vsel %vm101, %v99, %v99
    %vm103 = vcmask 1046534
    %v104 = vsel %vm103, %v99, %v102
    %v105 = vrot.slane %v100, 7
    %vm106 = vcmask 1041409
    %v107 = vsel %vm106, %v105, %v104
    %vm108 = vcmask 1043459
    %v109 = vsel %vm108, %v105, %v107
    %vm110 = vcmask 1045509
    %v111 = vsel %vm110, %v105, %v109
    %vm112 = vcmask 1047559
    %v113 = vsel %vm112, %v105, %v111
    %v115 = vadd.f32 %v49, %v113
    %116 = vst [vmem:[#allocation2] sm:$0xf] %v115
    %v117 = vld [vmem:[#allocation3] sm:$0xf]
    %118 = vst [vmem:[#allocation1] ss:$2 sm:$0xff] %v47
    %v119 = vld.sshfl [vmem:[#allocation1] sm:$0xff pattern:$0x75316420]
    %v120 = vld.sshfl [vmem:[#allocation1 + $0x8] sm:$0xff pattern:$0x75316420]
    %s121 = scalar_lea.vmem [#allocation1], 16
    %122 = vst [vmem:[%s121] ss:$2 sm:$0xff] %v48
    %v123 = vld.sshfl [vmem:[#allocation1 + $0x10] sm:$0xff pattern:$0x75316420]
    %v124 = vld.sshfl [vmem:[#allocation1 + $0x18] sm:$0xff pattern:$0x75316420]
    %v129 = vsel %vm63, %v119, -inf
    %v130 = vrot.slane %v129, 4
    %v131 = vmax.f32 %v129, %v130
    %v132 = vrot.slane %v131, 2
    %v133 = vmax.f32 %v131, %v132
    %v134 = vrot.slane %v133, 1
    %v135 = vmax.f32 %v133, %v134
    %v136 = vsel %vm63, %v120, -inf
    %v137 = vrot.slane %v136, 4
    %v138 = vmax.f32 %v136, %v137
    %v139 = vrot.slane %v138, 2
    %v140 = vmax.f32 %v138, %v139
    %v141 = vrot.slane %v140, 1
    %v142 = vmax.f32 %v140, %v141
    %v143 = vsel %vm63, %v123, -inf
    %v144 = vrot.slane %v143, 4
    %v145 = vmax.f32 %v143, %v144
    %v146 = vrot.slane %v145, 2
    %v147 = vmax.f32 %v145, %v146
    %v148 = vrot.slane %v147, 1
    %v149 = vmax.f32 %v147, %v148
    %v150 = vsel %vm63, %v124, -inf
    %v151 = vrot.slane %v150, 4
    %v152 = vmax.f32 %v150, %v151
    %v153 = vrot.slane %v152, 2
    %v154 = vmax.f32 %v152, %v153
    %v155 = vrot.slane %v154, 1
    %v156 = vmax.f32 %v154, %v155
    %v161 = vrot.slane %v142, 6
    %v162 = vrot.slane %v156, 6
    %v163 = vsel %vm98, %v135, %v161
    %v164 = vsel %vm98, %v149, %v162
    %v165 = vsel %vm101, %v163, %v163
    %v166 = vsel %vm103, %v163, %v165
    %v167 = vrot.slane %v164, 7
    %v168 = vsel %vm106, %v167, %v166
    %v169 = vsel %vm108, %v167, %v168
    %v170 = vsel %vm110, %v167, %v169
    %v171 = vsel %vm112, %v167, %v170
    %v173 = vmax.f32 %v117, %v171
    %174 = vst [vmem:[#allocation3] sm:$0xf] %v173
    // Predicated region
    $region22: #{tpu_custom_call.1} parent=1 // pred_check
      %p175 = pneg %p41
    $region23: #{tpu_custom_call.1} parent=1 // pred_check_branch
      %177 = sbr.rel (%p175) target = $region25
    $region24: #{tpu_custom_call.1} parent=1 // pred_region
      %v178 = vld [vmem:[#allocation2] sm:$0xf]
      %v179 = vld [vmem:[#allocation3] sm:$0xf]
      %v180 = vlaneseq
      %v181 = vand.u32 %v180, 127
      %v182 = vadd.s32 %v181, 128
      %vm183 = vcmp.lt.s32.totalorder %v181, 0
      %v184 = vsub.s32 0, %v181
      %v185 = vsel %vm183, %v184, %v181
      %v186 = vshrl.u32 %v185, 4
      %v187 = vand.u32 %v185, 15
      %v188 = vsub.s32 0, %v187
      %v189 = vsel %vm183, %v188, %v187
      %vm190 = vcmp.lt.s32.totalorder %v182, 0
      %v191 = vsub.s32 0, %v182
      %v192 = vsel %vm190, %v191, %v182
      %v193 = vshrl.u32 %v192, 4
      %v194 = vand.u32 %v192, 15
      %v195 = vsub.s32 0, %v194
      %v196 = vsel %vm190, %v195, %v194
      %vm197 = vcmp.ne.s32.totalorder %v189, 0
      %vm198 = vcmp.ne.s32.totalorder %v196, 0
      %vm199 = vcmp.lt.s32.totalorder %v189, 0
      %vm200 = vcmp.lt.s32.totalorder %v196, 0
      %vm201 = vmand %vm199, %vm197
      %vm202 = vmand %vm200, %vm198
      %v203 = vadd.s32 %v189, 16
      %v204 = vadd.s32 %v196, 16
      %v205 = vsel %vm201, %v203, %v189
      %v206 = vsel %vm202, %v204, %v196
      %vm207 = vcmp.ge.s32.totalorder %v181, 16
      %vm208 = vcmp.ge.s32.totalorder %v182, 16
      %vm209 = vcmp.lt.s32.totalorder %v181, 240
      %vm210 = vcmp.lt.s32.totalorder %v182, 240
      %vm211 = vcmp.ge.s32.totalorder %v205, 1
      %vm212 = vcmp.ge.s32.totalorder %v206, 1
      %vm213 = vcmp.le.s32.totalorder %v205, 14
      %vm214 = vcmp.le.s32.totalorder %v206, 14
      %vm215 = vmand %vm207, %vm211
      %vm216 = vmand %vm208, %vm212
      %vm217 = vmand %vm207, %vm213
      %vm218 = vmand %vm208, %vm214
      %vm219 = vmand %vm209, %vm211
      %vm220 = vmand %vm210, %vm212
      %vm221 = vmand %vm209, %vm213
      %vm222 = vmand %vm210, %vm214
      %s223 = sld [smem:[#allocation4]]
      %225 = vst [vmem:[#allocation1] ss:$4 sm:$0xff] %v178
      %v226 = vld.sshfl [vmem:[#allocation1] sm:$0xff pattern:$0x73625140]
      %v227 = vld.sshfl [vmem:[#allocation1 + $0x8] sm:$0xff pattern:$0x73625140]
      %230 = vrot.lane.b32.xlu0 %v226, 17
      %v231 = vpop.permute.xlu0 %230
      %232 = vrot.lane.b32.xlu0 %v227, 17
      %v233 = vpop.permute.xlu0 %232
      %vm234 = vcmp.lt.s32.totalorder %v181, 17
      %v235 = vsel %vm234, %v231, %v233
      %v236 = vsel %vm234, %v233, %v231
      %v237 = vsel %vm215, %v236, 0.0
      %v238 = vsel %vm216, %v235, 0.0
      %v239 = vstv %s223
      %v240 = vmul.f32 %v239, %v237
      %v241 = vmul.f32 %v239, %v238
      %v242 = vadd.f32 %v240, 0.0
      %v243 = vadd.f32 %v241, 0.0
      %s244 = sld [smem:[#allocation4 + $0x9]]
      %246 = vst [vmem:[#allocation1] ss:$4 sm:$0xff] %v179
      %v247 = vld.sshfl [vmem:[#allocation1] sm:$0xff pattern:$0x73625140]
      %v248 = vld.sshfl [vmem:[#allocation1 + $0x8] sm:$0xff pattern:$0x73625140]
      %251 = vrot.lane.b32.xlu0 %v247, 17
      %v252 = vpop.permute.xlu0 %251
      %253 = vrot.lane.b32.xlu0 %v248, 17
      %v254 = vpop.permute.xlu0 %253
      %v255 = vsel %vm234, %v252, %v254
      %v256 = vsel %vm234, %v254, %v252
      %v257 = vsel %vm215, %v256, 0.0
      %v258 = vsel %vm216, %v255, 0.0
      %v259 = vstv %s244
      %v260 = vmul.f32 %v259, %v257
      %v261 = vmul.f32 %v259, %v258
      %v262 = vadd.f32 %v260, 0.0
      %v263 = vadd.f32 %v261, 0.0
      %s264 = sld [smem:[#allocation4 + $0x1]]
      %265 = vst [vmem:[#allocation1] ss:$4 sm:$0xff] %v178
      %v266 = vld.sshfl [vmem:[#allocation1] sm:$0xff pattern:$0x73625140]
      %v267 = vld.sshfl [vmem:[#allocation1 + $0x8] sm:$0xff pattern:$0x73625140]
      %270 = vrot.lane.b32.xlu0 %v266, 16
      %v271 = vpop.permute.xlu0 %270
      %272 = vrot.lane.b32.xlu0 %v267, 16
      %v273 = vpop.permute.xlu0 %272
      %vm274 = vcmp.lt.s32.totalorder %v181, 16
      %v275 = vsel %vm274, %v271, %v273
      %v276 = vsel %vm274, %v273, %v271
      %v277 = vsel %vm207, %v276, 0.0
      %v278 = vsel %vm208, %v275, 0.0
      %v279 = vstv %s264
      %v280 = vmul.f32 %v279, %v277
      %v281 = vmul.f32 %v279, %v278
      %v282 = vadd.f32 %v242, %v280
      %v283 = vadd.f32 %v243, %v281
      %s284 = sld [smem:[#allocation4 + $0xa]]
      %285 = vst [vmem:[#allocation1] ss:$4 sm:$0xff] %v179
      %v286 = vld.sshfl [vmem:[#allocation1] sm:$0xff pattern:$0x73625140]
      %v287 = vld.sshfl [vmem:[#allocation1 + $0x8] sm:$0xff pattern:$0x73625140]
      %290 = vrot.lane.b32.xlu0 %v286, 16
      %v291 = vpop.permute.xlu0 %290
      %292 = vrot.lane.b32.xlu0 %v287, 16
      %v293 = vpop.permute.xlu0 %292
      %v294 = vsel %vm274, %v291, %v293
      %v295 = vsel %vm274, %v293, %v291
      %v296 = vsel %vm207, %v295, 0.0
      %v297 = vsel %vm208, %v294, 0.0
      %v298 = vstv %s284
      %v299 = vmul.f32 %v298, %v296
      %v300 = vmul.f32 %v298, %v297
      %v301 = vadd.f32 %v262, %v299
      %v302 = vadd.f32 %v263, %v300
      %s303 = sld [smem:[#allocation4 + $0x2]]
      %304 = vst [vmem:[#allocation1] ss:$4 sm:$0xff] %v178
      %v305 = vld.sshfl [vmem:[#allocation1] sm:$0xff pattern:$0x73625140]
      %v306 = vld.sshfl [vmem:[#allocation1 + $0x8] sm:$0xff pattern:$0x73625140]
      %309 = vrot.lane.b32.xlu0 %v305, 15
      %v310 = vpop.permute.xlu0 %309
      %311 = vrot.lane.b32.xlu0 %v306, 15
      %v312 = vpop.permute.xlu0 %311
      %vm313 = vcmp.lt.s32.totalorder %v181, 15
      %v314 = vsel %vm313, %v310, %v312
      %v315 = vsel %vm313, %v312, %v310
      %v316 = vsel %vm217, %v315, 0.0
      %v317 = vsel %vm218, %v314, 0.0
      %v318 = vstv %s303
      %v319 = vmul.f32 %v318, %v316
      %v320 = vmul.f32 %v318, %v317
      %v321 = vadd.f32 %v282, %v319
      %v322 = vadd.f32 %v283, %v320
      %s323 = sld [smem:[#allocation4 + $0xb]]
      %324 = vst [vmem:[#allocation1] ss:$4 sm:$0xff] %v179
      %v325 = vld.sshfl [vmem:[#allocation1] sm:$0xff pattern:$0x73625140]
      %v326 = vld.sshfl [vmem:[#allocation1 + $0x8] sm:$0xff pattern:$0x73625140]
      %329 = vrot.lane.b32.xlu0 %v325, 15
      %v330 = vpop.permute.xlu0 %329
      %331 = vrot.lane.b32.xlu0 %v326, 15
      %v332 = vpop.permute.xlu0 %331
      %v333 = vsel %vm313, %v330, %v332
      %v334 = vsel %vm313, %v332, %v330
      %v335 = vsel %vm217, %v334, 0.0
      %v336 = vsel %vm218, %v333, 0.0
      %v337 = vstv %s323
      %v338 = vmul.f32 %v337, %v335
      %v339 = vmul.f32 %v337, %v336
      %v340 = vadd.f32 %v301, %v338
      %v341 = vadd.f32 %v302, %v339
      %s342 = sld [smem:[#allocation4 + $0x3]]
      %343 = vst [vmem:[#allocation1] ss:$4 sm:$0xff] %v178
      %v344 = vld.sshfl [vmem:[#allocation1] sm:$0xff pattern:$0x73625140]
      %v345 = vld.sshfl [vmem:[#allocation1 + $0x8] sm:$0xff pattern:$0x73625140]
      %348 = vrot.lane.b32.xlu0 %v344, 1
      %v349 = vpop.permute.xlu0 %348
      %350 = vrot.lane.b32.xlu0 %v345, 1
      %v351 = vpop.permute.xlu0 %350
      %vm352 = vcmp.lt.s32.totalorder %v181, 1
      %v353 = vsel %vm352, %v349, %v351
      %v354 = vsel %vm352, %v351, %v349
      %v355 = vsel %vm211, %v354, 0.0
      %v356 = vsel %vm212, %v353, 0.0
      %v357 = vstv %s342
      %v358 = vmul.f32 %v357, %v355
      %v359 = vmul.f32 %v357, %v356
      %v360 = vadd.f32 %v321, %v358
      %v361 = vadd.f32 %v322, %v359
      %s362 = sld [smem:[#allocation4 + $0xc]]
      %363 = vst [vmem:[#allocation1] ss:$4 sm:$0xff] %v179
      %v364 = vld.sshfl [vmem:[#allocation1] sm:$0xff pattern:$0x73625140]
      %v365 = vld.sshfl [vmem:[#allocation1 + $0x8] sm:$0xff pattern:$0x73625140]
      %368 = vrot.lane.b32.xlu0 %v364, 1
      %v369 = vpop.permute.xlu0 %368
      %370 = vrot.lane.b32.xlu0 %v365, 1
      %v371 = vpop.permute.xlu0 %370
      %v372 = vsel %vm352, %v369, %v371
      %v373 = vsel %vm352, %v371, %v369
      %v374 = vsel %vm211, %v373, 0.0
      %v375 = vsel %vm212, %v372, 0.0
      %v376 = vstv %s362
      %v377 = vmul.f32 %v376, %v374
      %v378 = vmul.f32 %v376, %v375
      %v379 = vadd.f32 %v340, %v377
      %v380 = vadd.f32 %v341, %v378
      %s381 = sld [smem:[#allocation4 + $0x4]]
      %v382 = vstv %s381
      %v383 = vmul.f32 %v382, %v178
      %385 = vst [vmem:[#allocation1] ss:$4 sm:$0xff] %v383
      %v386 = vld.sshfl [vmem:[#allocation1] sm:$0xff pattern:$0x73625140]
      %v387 = vld.sshfl [vmem:[#allocation1 + $0x8] sm:$0xff pattern:$0x73625140]
      %v390 = vadd.f32 %v360, %v386
      %v391 = vadd.f32 %v361, %v387
      %s392 = sld [smem:[#allocation4 + $0xd]]
      %v393 = vstv %s392
      %v394 = vmul.f32 %v393, %v179
      %396 = vst [vmem:[#allocation1] ss:$4 sm:$0xff] %v394
      %v397 = vld.sshfl [vmem:[#allocation1] sm:$0xff pattern:$0x73625140]
      %v398 = vld.sshfl [vmem:[#allocation1 + $0x8] sm:$0xff pattern:$0x73625140]
      %v401 = vadd.f32 %v379, %v397
      %v402 = vadd.f32 %v380, %v398
      %s403 = sld [smem:[#allocation4 + $0x5]]
      %404 = vst [vmem:[#allocation1] ss:$4 sm:$0xff] %v178
      %v405 = vld.sshfl [vmem:[#allocation1] sm:$0xff pattern:$0x73625140]
      %v406 = vld.sshfl [vmem:[#allocation1 + $0x8] sm:$0xff pattern:$0x73625140]
      %409 = vrot.lane.b32.xlu0 %v405, 127
      %v410 = vpop.permute.xlu0 %409
      %411 = vrot.lane.b32.xlu0 %v406, 127
      %v412 = vpop.permute.xlu0 %411
      %vm413 = vcmp.lt.s32.totalorder %v181, 127
      %v414 = vsel %vm413, %v410, %v412
      %v415 = vsel %vm413, %v412, %v410
      %v416 = vsel %vm213, %v414, 0.0
      %v417 = vsel %vm214, %v415, 0.0
      %v418 = vstv %s403
      %v419 = vmul.f32 %v418, %v416
      %v420 = vmul.f32 %v418, %v417
      %v421 = vadd.f32 %v390, %v419
      %v422 = vadd.f32 %v391, %v420
      %s423 = sld [smem:[#allocation4 + $0xe]]
      %424 = vst [vmem:[#allocation1] ss:$4 sm:$0xff] %v179
      %v425 = vld.sshfl [vmem:[#allocation1] sm:$0xff pattern:$0x73625140]
      %v426 = vld.sshfl [vmem:[#allocation1 + $0x8] sm:$0xff pattern:$0x73625140]
      %429 = vrot.lane.b32.xlu0 %v425, 127
      %v430 = vpop.permute.xlu0 %429
      %431 = vrot.lane.b32.xlu0 %v426, 127
      %v432 = vpop.permute.xlu0 %431
      %v433 = vsel %vm413, %v430, %v432
      %v434 = vsel %vm413, %v432, %v430
      %v435 = vsel %vm213, %v433, 0.0
      %v436 = vsel %vm214, %v434, 0.0
      %v437 = vstv %s423
      %v438 = vmul.f32 %v437, %v435
      %v439 = vmul.f32 %v437, %v436
      %v440 = vadd.f32 %v401, %v438
      %v441 = vadd.f32 %v402, %v439
      %s442 = sld [smem:[#allocation4 + $0x6]]
      %443 = vst [vmem:[#allocation1] ss:$4 sm:$0xff] %v178
      %v444 = vld.sshfl [vmem:[#allocation1] sm:$0xff pattern:$0x73625140]
      %v445 = vld.sshfl [vmem:[#allocation1 + $0x8] sm:$0xff pattern:$0x73625140]
      %448 = vrot.lane.b32.xlu0 %v444, 113
      %v449 = vpop.permute.xlu0 %448
      %450 = vrot.lane.b32.xlu0 %v445, 113
      %v451 = vpop.permute.xlu0 %450
      %vm452 = vcmp.lt.s32.totalorder %v181, 113
      %v453 = vsel %vm452, %v449, %v451
      %v454 = vsel %vm452, %v451, %v449
      %v455 = vsel %vm219, %v453, 0.0
      %v456 = vsel %vm220, %v454, 0.0
      %v457 = vstv %s442
      %v458 = vmul.f32 %v457, %v455
      %v459 = vmul.f32 %v457, %v456
      %v460 = vadd.f32 %v421, %v458
      %v461 = vadd.f32 %v422, %v459
      %s462 = sld [smem:[#allocation4 + $0xf]]
      %463 = vst [vmem:[#allocation1] ss:$4 sm:$0xff] %v179
      %v464 = vld.sshfl [vmem:[#allocation1] sm:$0xff pattern:$0x73625140]
      %v465 = vld.sshfl [vmem:[#allocation1 + $0x8] sm:$0xff pattern:$0x73625140]
      %468 = vrot.lane.b32.xlu0 %v464, 113
      %v469 = vpop.permute.xlu0 %468
      %470 = vrot.lane.b32.xlu0 %v465, 113
      %v471 = vpop.permute.xlu0 %470
      %v472 = vsel %vm452, %v469, %v471
      %v473 = vsel %vm452, %v471, %v469
      %v474 = vsel %vm219, %v472, 0.0
      %v475 = vsel %vm220, %v473, 0.0
      %v476 = vstv %s462
      %v477 = vmul.f32 %v476, %v474
      %v478 = vmul.f32 %v476, %v475
      %v479 = vadd.f32 %v440, %v477
      %v480 = vadd.f32 %v441, %v478
      %s481 = sld [smem:[#allocation4 + $0x7]]
      %482 = vst [vmem:[#allocation1] ss:$4 sm:$0xff] %v178
      %v483 = vld.sshfl [vmem:[#allocation1] sm:$0xff pattern:$0x73625140]
      %v484 = vld.sshfl [vmem:[#allocation1 + $0x8] sm:$0xff pattern:$0x73625140]
      %487 = vrot.lane.b32.xlu0 %v483, 112
      %v488 = vpop.permute.xlu0 %487
      %489 = vrot.lane.b32.xlu0 %v484, 112
      %v490 = vpop.permute.xlu0 %489
      %vm491 = vcmp.lt.s32.totalorder %v181, 112
      %v492 = vsel %vm491, %v488, %v490
      %v493 = vsel %vm491, %v490, %v488
      %v494 = vsel %vm209, %v492, 0.0
      %v495 = vsel %vm210, %v493, 0.0
      %v496 = vstv %s481
      %v497 = vmul.f32 %v496, %v494
      %v498 = vmul.f32 %v496, %v495
      %v499 = vadd.f32 %v460, %v497
      %v500 = vadd.f32 %v461, %v498
      %s501 = sld [smem:[#allocation4 + $0x10]]
      %502 = vst [vmem:[#allocation1] ss:$4 sm:$0xff] %v179
      %v503 = vld.sshfl [vmem:[#allocation1] sm:$0xff pattern:$0x73625140]
      %v504 = vld.sshfl [vmem:[#allocation1 + $0x8] sm:$0xff pattern:$0x73625140]
      %507 = vrot.lane.b32.xlu0 %v503, 112
      %v508 = vpop.permute.xlu0 %507
      %509 = vrot.lane.b32.xlu0 %v504, 112
      %v510 = vpop.permute.xlu0 %509
      %v511 = vsel %vm491, %v508, %v510
      %v512 = vsel %vm491, %v510, %v508
      %v513 = vsel %vm209, %v511, 0.0
      %v514 = vsel %vm210, %v512, 0.0
      %v515 = vstv %s501
      %v516 = vmul.f32 %v515, %v513
      %v517 = vmul.f32 %v515, %v514
      %v518 = vadd.f32 %v479, %v516
      %v519 = vadd.f32 %v480, %v517
      %s520 = sld [smem:[#allocation4 + $0x8]]
      %521 = vst [vmem:[#allocation1] ss:$4 sm:$0xff] %v178
      %v522 = vld.sshfl [vmem:[#allocation1] sm:$0xff pattern:$0x73625140]
      %v523 = vld.sshfl [vmem:[#allocation1 + $0x8] sm:$0xff pattern:$0x73625140]
      %526 = vrot.lane.b32.xlu0 %v522, 111
      %v527 = vpop.permute.xlu0 %526
      %528 = vrot.lane.b32.xlu0 %v523, 111
      %v529 = vpop.permute.xlu0 %528
      %vm530 = vcmp.lt.s32.totalorder %v181, 111
      %v531 = vsel %vm530, %v527, %v529
      %v532 = vsel %vm530, %v529, %v527
      %v533 = vsel %vm221, %v531, 0.0
      %v534 = vsel %vm222, %v532, 0.0
      %v535 = vstv %s520
      %v536 = vmul.f32 %v535, %v533
      %v537 = vmul.f32 %v535, %v534
      %v538 = vadd.f32 %v499, %v536
      %v539 = vadd.f32 %v500, %v537
      %s540 = sld [smem:[#allocation4 + $0x11]]
      %541 = vst [vmem:[#allocation1] ss:$4 sm:$0xff] %v179
      %v542 = vld.sshfl [vmem:[#allocation1] sm:$0xff pattern:$0x73625140]
      %v543 = vld.sshfl [vmem:[#allocation1 + $0x8] sm:$0xff pattern:$0x73625140]
      %546 = vrot.lane.b32.xlu0 %v542, 111
      %v547 = vpop.permute.xlu0 %546
      %548 = vrot.lane.b32.xlu0 %v543, 111
      %v549 = vpop.permute.xlu0 %548
      %v550 = vsel %vm530, %v547, %v549
      %v551 = vsel %vm530, %v549, %v547
      %v552 = vsel %vm221, %v550, 0.0
      %v553 = vsel %vm222, %v551, 0.0
      %v554 = vstv %s540
      %v555 = vmul.f32 %v554, %v552
      %v556 = vmul.f32 %v554, %v553
      %v557 = vadd.f32 %v518, %v555
      %v558 = vadd.f32 %v519, %v556
      %v559 = vadd.f32 %v538, %v557
      %v560 = vadd.f32 %v539, %v558
      %v561 = vxor.u32 %v559, 2147483648
      %v562 = vxor.u32 %v560, 2147483648
      %v563 = vmul.f32 %v561, 1.442695
      %v564 = vpow.pop %v563
      %v565 = vmul.f32 %v562, 1.442695
      %v566 = vpow.pop %v565
      %v567 = vadd.f32 %v564, 1.0
      %v568 = vadd.f32 %v566, 1.0
      %v569 = vrcp.pop %v567
      %v570 = vmul.f32 %v567, %v569
      %v571 = vsub.f32 1.0, %v570
      %v572 = vmul.f32 %v569, %v571
      %v573 = vadd.f32 %v569, %v572
      %vm574 = vweird.f32 %v567
      %vm575 = vweird.f32 %v569
      %vm576 = vmor %vm574, %vm575
      %v577 = vsel %vm576, %v569, %v573
      %v578 = vand.u32 2147483647, %v567
      %vm579 = vcmp.eq.f32.partialorder %v578, 8.507059e+37
      %v580 = vand.u32 %v567, 2147483648
      %v581 = vor.u32 1.1754944e-38, %v580
      %v582 = vsel %vm579, %v581, %v577
      %v583 = vmul.f32 1.0, %v582
      %v584 = vrcp.pop %v568
      %v585 = vmul.f32 %v568, %v584
      %v586 = vsub.f32 1.0, %v585
      %v587 = vmul.f32 %v584, %v586
      %v588 = vadd.f32 %v584, %v587
      %vm589 = vweird.f32 %v568
      %vm590 = vweird.f32 %v584
      %vm591 = vmor %vm589, %vm590
      %v592 = vsel %vm591, %v584, %v588
      %v593 = vand.u32 2147483647, %v568
      %vm594 = vcmp.eq.f32.partialorder %v593, 8.507059e+37
      %v595 = vand.u32 %v568, 2147483648
      %v596 = vor.u32 1.1754944e-38, %v595
      %v597 = vsel %vm594, %v596, %v592
      %v598 = vmul.f32 1.0, %v597
      %v601 = vrot.slane %v598, 6
      %v602 = vsel %vm98, %v583, %v601
      %604 = vst [vmem:[#allocation9] sm:$0xf] %v602
    $region25: #{tpu_custom_call.1} parent=1 // pred_fallthru
      _
    // Predicated region
    $region26: #{tpu_custom_call.1} parent=1 // pred_check
      _
    $region27: #{tpu_custom_call.1} parent=1 // pred_check_branch
      %606 = sbr.rel (0) target = $region29
    $region28: #{tpu_custom_call.1} parent=1 // pred_region
      %608 = vsyncadd [#allocation6], 0
      %s610 = sshll.u32 [#allocation9], 4
      %s611 = int_to_ptr.vmem [resolvable:$true] %s610
      %s612 = sshll.u32 %s2, 4
      %s613 = int_to_ptr.hbm [resolvable:$true] %s612
      %615 = dma.vmem_to_hbm [thread:$0]  %s611, 64, %s613, [#allocation6]
    $region29: #{tpu_custom_call.1} parent=1 // pred_fallthru
      _
    // Predicated region
    $region30: #{tpu_custom_call.1} parent=1 // pred_check
      _
    $region31: #{tpu_custom_call.1} parent=1 // pred_check_branch
      %617 = sbr.rel (0) target = $region33
    $region32: #{tpu_custom_call.1} parent=1 // pred_region
      %619 = dma.done [#allocation6], 64
    $region33: #{tpu_custom_call.1} parent=1 // pred_fallthru
      _
    %620 = vsyncpa [#allocation5], 1
    %621 = vsyncpa [#allocation6], 1
    %622 = vsyncpa [#allocation7], 1

</llo_original>
